<compile_context>
chip_gen: v7x
topology: tpu7x:2x2x1
jax: 0.10.0
libtpu: 0.0.40
codegen_flags: <defaults>
</compile_context>

<pallas_src>
import jax
import jax.numpy as jnp
from jax.experimental import pallas as pl
from jax.experimental.pallas import tpu as pltpu

LN_EPS = 1e-5  # torch.nn.LayerNorm default


def _residual_kernel(x_ref, params_ref, w_ref, o_ref):
    # x_ref:      (tm, E)  row tile (full embed dim, needed for LayerNorm)
    # params_ref: (3, E)   rows = [gamma, beta, bias]
    # w_ref:      (E, tn)  column slab of the sublayer weight
    # o_ref:      (tm, tn) output tile
    E = x_ref.shape[-1]
    tn = o_ref.shape[-1]
    full_width = (tn == E)  # static (trace-time) decision

    x = x_ref[...].astype(jnp.float32)                    # (tm, E)
    gamma = params_ref[0:1, :].astype(jnp.float32)        # (1, E)
    beta = params_ref[1:2, :].astype(jnp.float32)         # (1, E)

    # LayerNorm over the embedding (lane) dim, biased variance like PyTorch.
    mean = jnp.mean(x, axis=-1, keepdims=True)
    centered = x - mean
    var = jnp.mean(centered * centered, axis=-1, keepdims=True)
    y = centered * jax.lax.rsqrt(var + LN_EPS) * gamma + beta

    # Sublayer: dense projection on the MXU in W's dtype (bf16 recommended),
    # f32 accumulation.
    z = jnp.dot(y.astype(w_ref.dtype), w_ref[...],
                preferred_element_type=jnp.float32)

    if full_width:
        # Common path: whole embed dim in one slab -> no dynamic slicing,
        # residual reuses the f32 x tile already in vregs.
        bias = params_ref[2:3, :].astype(jnp.float32)
        x_res = x
    else:
        j = pl.program_id(1)
        col0 = pl.multiple_of(j * tn, tn)
        bias = params_ref[2:3, pl.ds(col0, tn)].astype(jnp.float32)
        # Re-read just the needed x columns instead of keeping the whole f32
        # x tile live across the matmul (lower vreg pressure at large tiles).
        x_res = x_ref[:, pl.ds(col0, tn)].astype(jnp.float32)

    # TODO(synk): training-mode dropout (p > 0) would use pltpu.prng_seed /
    # pltpu.prng_random_bits here; test=True => p = 0 => identity.

    o_ref[...] = (x_res + z + bias).astype(o_ref.dtype)


def _round_up(v, m):
    return (v + m - 1) // m * m


def _vmem_bytes(tm, tn, E, x_bytes, w_bytes, out_bytes):
    # Conservative: assume the pipeline double-buffers every operand.
    return (2 * tm * E * x_bytes        # x tiles
            + 2 * tm * tn * out_bytes   # output tiles
            + 2 * E * tn * w_bytes      # weight slab
            + 2 * 8 * E * 4)            # gamma/beta/bias (padded)


def _pick_tn(E, tm, x_bytes, w_bytes, out_bytes, budget):
    # Prefer the full weight resident (tn = E); otherwise halve the column
    # slab while it stays a lane-dense multiple of 128 that divides E.
    cands = [E]
    t = E
    while t % 2 == 0 and (t // 2) % 128 == 0:
        t //= 2
        cands.append(t)
    for tn in cands:
        if _vmem_bytes(tm, tn, E, x_bytes, w_bytes, out_bytes) <= budget:
            return tn
    return cands[-1]


def residual_network(x, gamma, beta, w, b, *, tm=512, vmem_budget=48 << 20):
    """x: [B, S, E] -> [B, S, E].  Sublayer = x @ W + b, W: [E, E]."""
    B, S, E = x.shape
    assert w.shape == (E, E)
    rows = B * S

    x_bytes = jnp.dtype(x.dtype).itemsize
    w_bytes = jnp.dtype(w.dtype).itemsize
    out_bytes = x_bytes

    # Row tile: MXU-aligned 256/512 for large inputs, but a single
    # sublane-aligned tile for small inputs (avoids padding waste).
    target = _round_up(tm, 256)
    if rows >= target:
        row_tile = target
    else:
        row_tile = _round_up(rows, 8)
    padded_rows = _round_up(rows, row_tile)

    tn = _pick_tn(E, row_tile, x_bytes, w_bytes, out_bytes, vmem_budget)
    vmem_needed = _vmem_bytes(row_tile, tn, E, x_bytes, w_bytes, out_bytes)
    # Cap at 48 MiB so we stay inside v7x's 64 MiB physical VMEM with headroom.
    vmem_limit = int(min(max(2 * vmem_needed, 32 << 20), 48 << 20))

    x2d = x.reshape(rows, E)
    if padded_rows != rows:
        x2d = jnp.pad(x2d, ((0, padded_rows - rows), (0, 0)))

    # Merge the three small (E,) parameters into a single (3, E) operand.
    params = jnp.stack(
        [gamma.astype(jnp.float32),
         beta.astype(jnp.float32),
         b.astype(jnp.float32)], axis=0)

    grid = (padded_rows // row_tile, E // tn)

    out2d = pl.pallas_call(
        _residual_kernel,
        out_shape=jax.ShapeDtypeStruct((padded_rows, E), x.dtype),
        grid_spec=pltpu.PrefetchScalarGridSpec(
            num_scalar_prefetch=0,
            grid=grid,
            in_specs=[
                pl.BlockSpec((row_tile, E), lambda i, j: (i, 0)),  # x rows
                pl.BlockSpec((3, E), lambda i, j: (0, 0)),         # g/b/bias
                pl.BlockSpec((E, tn), lambda i, j: (0, j)),        # W columns
            ],
            out_specs=pl.BlockSpec((row_tile, tn), lambda i, j: (i, j)),
        ),
        compiler_params=pltpu.CompilerParams(
            dimension_semantics=("parallel", "arbitrary"),
            vmem_limit_bytes=vmem_limit),
    )(x2d, params, w)

    if padded_rows != rows:
        out2d = out2d[:rows]
    return out2d.reshape(B, S, E)


def _reference(x, gamma, beta, w, b):
    xf = x.astype(jnp.float32)
    mean = jnp.mean(xf, axis=-1, keepdims=True)
    var = jnp.mean((xf - mean) ** 2, axis=-1, keepdims=True)
    y = (xf - mean) * jax.lax.rsqrt(var + LN_EPS) * gamma + beta
    z = jnp.einsum("bse,ef->bsf", y.astype(w.dtype), w,
                   preferred_element_type=jnp.float32)
    z = z + b.astype(jnp.float32)
    return (xf + z).astype(x.dtype)


if __name__ == "__main__":
    B, S, E = 2, 8, 128  # E multiple of 128 -> lane-dense tiles / MXU columns
    key = jax.random.PRNGKey(0)
    kx, kw, kb = jax.random.split(key, 3)

    x = jax.random.normal(kx, (B, S, E), dtype=jnp.float32)

    # LayerNorm params (gamma=1, beta=0 like a fresh nn.LayerNorm); dense
    # sublayer weight stored in bf16 so the MXU runs its fast bf16 path.
    gamma = jnp.ones((E,), jnp.float32)
    beta = jnp.zeros((E,), jnp.float32)
    w = (jax.random.normal(kw, (E, E), dtype=jnp.float32)
         * (1.0 / jnp.sqrt(E))).astype(jnp.bfloat16)
    b = jax.random.normal(kb, (E,), dtype=jnp.float32) * 0.01

    out = residual_network(x, gamma, beta, w, b)
    jax.block_until_ready(out)

    ref = _reference(x, gamma, beta, w, b)
    assert out.shape == (B, S, E)
    max_err = jnp.max(jnp.abs(out - ref))
    assert jnp.allclose(out, ref, atol=1e-2, rtol=1e-2), (
        f"mismatch vs reference (max abs err {max_err})")

    print("KERNEL_OK")
</pallas_src>

<mosaic_0001>
module attributes {stable_mosaic.version = 11 : i64} {
  func.func @_residual_kernel(%arg0: i32, %arg1: i32, %arg2: memref<16x128xf32, #tpu.memory_space<vmem>>, %arg3: memref<3x128xf32, #tpu.memory_space<vmem>>, %arg4: memref<128x128xbf16, #tpu.memory_space<vmem>>, %arg5: memref<16x128xf32, #tpu.memory_space<vmem>>) attributes {dimension_semantics = [#tpu.dimension_semantics<parallel>, #tpu.dimension_semantics<arbitrary>], iteration_bounds = array<i64: 1, 1>, scalar_prefetch = 0 : i64, scratch_operands = 0 : i64, tpu.core_type = #tpu.core_type<tc>, window_params = [{transform_indices = @transform_0, window_bounds = array<i64: 16, 128>}, {pipeline_mode = #tpu.pipeline_mode<synchronous>, transform_indices = @transform_1, window_bounds = array<i64: 3, 128>}, {transform_indices = @transform_2, window_bounds = array<i64: 128, 128>}, {transform_indices = @transform_3, window_bounds = array<i64: 16, 128>}]} {
    %c0 = arith.constant 0 : index
    %c0_0 = arith.constant 0 : index
    %0 = vector.load %arg2[%c0, %c0_0] : memref<16x128xf32, #tpu.memory_space<vmem>>, vector<16x128xf32>
    %c0_1 = arith.constant 0 : index
    %c0_2 = arith.constant 0 : index
    %1 = vector.load %arg3[%c0_1, %c0_2] : memref<3x128xf32, #tpu.memory_space<vmem>>, vector<1x128xf32>
    %c1 = arith.constant 1 : index
    %c0_3 = arith.constant 0 : index
    %2 = vector.load %arg3[%c1, %c0_3] : memref<3x128xf32, #tpu.memory_space<vmem>>, vector<1x128xf32>
    %cst = arith.constant dense<0.000000e+00> : vector<16xf32>
    %3 = vector.multi_reduction <add>, %0, %cst [1] : vector<16x128xf32> to vector<16xf32>
    %4 = vector.shape_cast %3 : vector<16xf32> to vector<16x1xf32>
    %cst_4 = arith.constant 1.280000e+02 : f32
    %5 = vector.broadcast %cst_4 : f32 to vector<16x1xf32>
    %6 = arith.divf %4, %5 : vector<16x1xf32>
    %7 = vector.broadcast %6 : vector<16x1xf32> to vector<16x128xf32>
    %8 = arith.subf %0, %7 : vector<16x128xf32>
    %9 = arith.mulf %8, %8 : vector<16x128xf32>
    %cst_5 = arith.constant dense<0.000000e+00> : vector<16xf32>
    %10 = vector.multi_reduction <add>, %9, %cst_5 [1] : vector<16x128xf32> to vector<16xf32>
    %11 = vector.shape_cast %10 : vector<16xf32> to vector<16x1xf32>
    %cst_6 = arith.constant 1.280000e+02 : f32
    %12 = vector.broadcast %cst_6 : f32 to vector<16x1xf32>
    %13 = arith.divf %11, %12 : vector<16x1xf32>
    %cst_7 = arith.constant 9.99999974E-6 : f32
    %14 = vector.broadcast %cst_7 : f32 to vector<16x1xf32>
    %15 = arith.addf %13, %14 : vector<16x1xf32>
    %16 = math.rsqrt %15 : vector<16x1xf32>
    %17 = vector.broadcast %16 : vector<16x1xf32> to vector<16x128xf32>
    %18 = arith.mulf %8, %17 : vector<16x128xf32>
    %19 = vector.broadcast %1 : vector<1x128xf32> to vector<16x128xf32>
    %20 = arith.mulf %18, %19 : vector<16x128xf32>
    %21 = vector.broadcast %2 : vector<1x128xf32> to vector<16x128xf32>
    %22 = arith.addf %20, %21 : vector<16x128xf32>
    %23 = arith.truncf %22 : vector<16x128xf32> to vector<16x128xbf16>
    %c0_8 = arith.constant 0 : index
    %c0_9 = arith.constant 0 : index
    %24 = vector.load %arg4[%c0_8, %c0_9] : memref<128x128xbf16, #tpu.memory_space<vmem>>, vector<128x128xbf16>
    %cst_10 = arith.constant dense<0.000000e+00> : vector<16x128xf32>
    %25 = tpu.matmul %23, %24, %cst_10 {dimension_numbers = #tpu.dot_dimension_numbers<[1], [0], [0], [1], [0, 0, 1, 1], [], []>} : vector<16x128xbf16>, vector<128x128xbf16>, vector<16x128xf32> -> vector<16x128xf32>
    %c2 = arith.constant 2 : index
    %c0_11 = arith.constant 0 : index
    %26 = vector.load %arg3[%c2, %c0_11] : memref<3x128xf32, #tpu.memory_space<vmem>>, vector<1x128xf32>
    %27 = arith.addf %0, %25 : vector<16x128xf32>
    %28 = vector.broadcast %26 : vector<1x128xf32> to vector<16x128xf32>
    %29 = arith.addf %27, %28 : vector<16x128xf32>
    %c0_12 = arith.constant 0 : index
    %c0_13 = arith.constant 0 : index
    %30 = vector.load %arg5[%c0_12, %c0_13] : memref<16x128xf32, #tpu.memory_space<vmem>>, vector<16x128xf32>
    tpu.vector_store %arg5[%c0_12, %c0_13], %29 {strides = array<i32>} : memref<16x128xf32, #tpu.memory_space<vmem>>, vector<16x128xf32>,
    return
  }
  func.func @transform_0(%arg0: i32, %arg1: i32) -> (i32, i32) {
    %c0_i32 = arith.constant 0 : i32
    %c0_i32_0 = arith.constant 0 : i32
    return %arg0, %c0_i32 : i32, i32
  }
  func.func @transform_1(%arg0: i32, %arg1: i32) -> (i32, i32) {
    %c0_i32 = arith.constant 0 : i32
    %c0_i32_0 = arith.constant 0 : i32
    %c0_i32_1 = arith.constant 0 : i32
    return %c0_i32, %c0_i32_0 : i32, i32
  }
  func.func @transform_2(%arg0: i32, %arg1: i32) -> (i32, i32) {
    %c0_i32 = arith.constant 0 : i32
    %c0_i32_0 = arith.constant 0 : i32
    return %c0_i32, %arg1 : i32, i32
  }
  func.func @transform_3(%arg0: i32, %arg1: i32) -> (i32, i32) {
    %c0_i32 = arith.constant 0 : i32
    return %arg0, %arg1 : i32, i32
  }
}

</mosaic_0001>

<llo_original>
// kernel: tpu_custom_call.1
$region0: #{tpu_custom_call.1}
  #allocation0 [shape = 'u32[]', space=smem, size = 0x4, offset = 0x4, fixed_abs, tag = 'smem constant byte address 0x4 - core index']
  #allocation1 [shape = 'u32[144,128]{1,0:T(1,128)}', space=vmem, size = 0x12000, scoped, tag = 'internal scratch']
  %s0 = inlined_call_operand.hbm [shape: f32[16,128], index: 0, kind: input, shape index: {}]
  %s1 = inlined_call_operand.hbm [shape: f32[3,128], index: 1, kind: input, shape index: {}]
  %s2 = inlined_call_operand.hbm [shape: bf16[128,128], index: 2, kind: input, shape index: {}]
  %s3 = inlined_call_operand.hbm [shape: f32[16,128], index: 3, kind: output, shape index: {}]
  %s4 = sld [smem:[#allocation0]]
  $region34: #{tpu_custom_call.1} parent=0
    _
  %s6 = ssub.s32 1, %s4
  %s7 = scalar_select 0, %s6, %s4
  $region1: #{tpu_custom_call.1} parent=0
    #allocation2 [shape = 'u8[8192]{0}', space=vmem, size = 0x2000, scoped, tag = 'input window, operand 0, single buffered']
    #allocation3 [shape = 's32[1]{0}', space=sflag, size = 0x4, scoped, tag = 'scoped memory for tpu_custom_call.1']
    #allocation4 [shape = 's32[1]{0}', space=sflag, size = 0x4, scoped, tag = 'scoped memory for tpu_custom_call.1']
    #allocation5 [shape = 'u8[2048]{0}', space=vmem, size = 0x800, scoped, tag = 'input window, operand 1, single buffered']
    #allocation6 [shape = 's32[1]{0}', space=sflag, size = 0x4, scoped, tag = 'scoped memory for tpu_custom_call.1']
    #allocation7 [shape = 'u8[32768]{0}', space=vmem, size = 0x8000, scoped, tag = 'input window, operand 2, single buffered']
    #allocation8 [shape = 'u8[8192]{0}', space=vmem, size = 0x2000, scoped, tag = 'output window, operand 0, single buffered']
    %8 = vsyncpa [#allocation3], 0
    %9 = vsyncpa [#allocation6], 0
    %10 = vsyncpa [#allocation4], 0
    // Predicated region
    $region2: #{tpu_custom_call.1} parent=1 // pred_check
      _
    $region3: #{tpu_custom_call.1} parent=1 // pred_check_branch
      %12 = sbr.rel (0) target = $region5
    $region4: #{tpu_custom_call.1} parent=1 // pred_region
      %s14 = ssub.s32 256, 256
      %15 = vsyncadd [#allocation3], %s14
      %s16 = sshll.u32 [#allocation2], 4
      %s17 = int_to_ptr.vmem [resolvable:$true] %s16
      %22 = dma.hbm_to_vmem [thread:$0]  %s0, 256, %s17, [#allocation3], 128, 128, 8
    $region5: #{tpu_custom_call.1} parent=1 // pred_fallthru
      _
    // Predicated region
    $region6: #{tpu_custom_call.1} parent=1 // pred_check
      _
    $region7: #{tpu_custom_call.1} parent=1 // pred_check_branch
      %24 = sbr.rel (0) target = $region9
    $region8: #{tpu_custom_call.1} parent=1 // pred_region
      %s26 = ssub.s32 64, 64
      %27 = vsyncadd [#allocation6], %s26
      %s29 = sshll.u32 [#allocation5], 4
      %s30 = int_to_ptr.vmem [resolvable:$true] %s29
      %32 = dma.hbm_to_vmem [thread:$0]  %s1, 64, %s30, [#allocation6]
    $region9: #{tpu_custom_call.1} parent=1 // pred_fallthru
      _
    // Predicated region
    $region10: #{tpu_custom_call.1} parent=1 // pred_check
      _
    $region11: #{tpu_custom_call.1} parent=1 // pred_check_branch
      %34 = sbr.rel (0) target = $region13
    $region12: #{tpu_custom_call.1} parent=1 // pred_region
      %s36 = ssub.s32 1024, 1024
      %37 = vsyncadd [#allocation6], %s36
      %s38 = sshll.u32 [#allocation7], 4
      %s39 = int_to_ptr.vmem [resolvable:$true] %s38
      %44 = dma.hbm_to_vmem [thread:$0]  %s2, 1024, %s39, [#allocation6], 64, 64, 4
    $region13: #{tpu_custom_call.1} parent=1 // pred_fallthru
      _
    // Predicated region
    $region14: #{tpu_custom_call.1} parent=1 // pred_check
      _
    $region15: #{tpu_custom_call.1} parent=1 // pred_check_branch
      %46 = sbr.rel (0) target = $region17
    $region16: #{tpu_custom_call.1} parent=1 // pred_region
      %47 = dma.done [#allocation3], 256
    $region17: #{tpu_custom_call.1} parent=1 // pred_fallthru
      _
    // Predicated region
    $region18: #{tpu_custom_call.1} parent=1 // pred_check
      _
    $region19: #{tpu_custom_call.1} parent=1 // pred_check_branch
      %49 = sbr.rel (0) target = $region21
    $region20: #{tpu_custom_call.1} parent=1 // pred_region
      %50 = dma.done [#allocation6], 64
    $region21: #{tpu_custom_call.1} parent=1 // pred_fallthru
      _
    // Predicated region
    $region22: #{tpu_custom_call.1} parent=1 // pred_check
      _
    $region23: #{tpu_custom_call.1} parent=1 // pred_check_branch
      %52 = sbr.rel (0) target = $region25
    $region24: #{tpu_custom_call.1} parent=1 // pred_region
      %53 = dma.done [#allocation6], 1024
    $region25: #{tpu_custom_call.1} parent=1 // pred_fallthru
      _
    %v55 = vld [vmem:[#allocation2] sm:$0xff]
    %v56 = vld [vmem:[#allocation2 + $0x8] sm:$0xff]
    %v57 = vld [vmem:[#allocation5] sm:$0x1]
    %v58 = vld [vmem:[#allocation5 + $0x1] sm:$0x1]
    %59 = vadd.xlane.f32.xlu0 %v55
    %v60 = vpop.xlane.xlu0 %59
    %61 = vadd.xlane.f32.xlu0 %v56
    %v62 = vpop.xlane.xlu0 %61
    %v63 = vrcp.pop 128.0
    %v64 = vmul.f32 %v60, %v63
    %v65 = vmul.f32 %v62, %v63
    %v66 = vsub.f32 %v55, %v64
    %v67 = vsub.f32 %v56, %v65
    %v68 = vmul.f32 %v66, %v66
    %v69 = vmul.f32 %v67, %v67
    %70 = vadd.xlane.f32.xlu0 %v68
    %v71 = vpop.xlane.xlu0 %70
    %72 = vadd.xlane.f32.xlu0 %v69
    %v73 = vpop.xlane.xlu0 %72
    %v74 = vmul.f32 %v71, %v63
    %v75 = vmul.f32 %v73, %v63
    %v76 = vadd.f32 %v74, 1e-05
    %v77 = vadd.f32 %v75, 1e-05
    %v78 = vrsqrt.pop %v76
    %v79 = vrsqrt.pop %v77
    %v80 = vmul.f32 %v66, %v78
    %v81 = vmul.f32 %v67, %v79
    %v82 = vlaneseq
    %v83 = vshrl.u32 %v82, 7
    %v84 = vsub.s32 0, %v83
    %v85 = vrot.slane %v57, %v84
    %v86 = vmul.f32 %v80, %v85
    %v87 = vmul.f32 %v81, %v85
    %v88 = vlaneseq
    %v89 = vshrl.u32 %v88, 7
    %v90 = vsub.s32 0, %v89
    %v91 = vrot.slane %v58, %v90
    %v92 = vadd.f32 %v86, %v91
    %v93 = vadd.f32 %v87, %v91
    %v94 = vpack.c.bf16 %v93, %v92
    %v95 = vld [vmem:[#allocation7] sm:$0xf]
    %v96 = vld [vmem:[#allocation7 + $0x4] sm:$0xf]
    %v97 = vld [vmem:[#allocation7 + $0x8] sm:$0xf]
    %v98 = vld [vmem:[#allocation7 + $0xc] sm:$0xf]
    %v99 = vld [vmem:[#allocation7 + $0x10] sm:$0xf]
    %v100 = vld [vmem:[#allocation7 + $0x14] sm:$0xf]
    %v101 = vld [vmem:[#allocation7 + $0x18] sm:$0xf]
    %v102 = vld [vmem:[#allocation7 + $0x1c] sm:$0xf]
    %v103 = vld [vmem:[#allocation7 + $0x20] sm:$0xf]
    %v104 = vld [vmem:[#allocation7 + $0x24] sm:$0xf]
    %v105 = vld [vmem:[#allocation7 + $0x28] sm:$0xf]
    %v106 = vld [vmem:[#allocation7 + $0x2c] sm:$0xf]
    %v107 = vld [vmem:[#allocation7 + $0x30] sm:$0xf]
    %v108 = vld [vmem:[#allocation7 + $0x34] sm:$0xf]
    %v109 = vld [vmem:[#allocation7 + $0x38] sm:$0xf]
    %v110 = vld [vmem:[#allocation7 + $0x3c] sm:$0xf]
    %v127 = vunpack.c.l.b16 %v95
    %v128 = vunpack.c.l.b16 %v96
    %v129 = vunpack.c.l.b16 %v97
    %v130 = vunpack.c.l.b16 %v98
    %v131 = vunpack.c.l.b16 %v99
    %v132 = vunpack.c.l.b16 %v100
    %v133 = vunpack.c.l.b16 %v101
    %v134 = vunpack.c.l.b16 %v102
    %v135 = vunpack.c.l.b16 %v103
    %v136 = vunpack.c.l.b16 %v104
    %v137 = vunpack.c.l.b16 %v105
    %v138 = vunpack.c.l.b16 %v106
    %v139 = vunpack.c.l.b16 %v107
    %v140 = vunpack.c.l.b16 %v108
    %v141 = vunpack.c.l.b16 %v109
    %v142 = vunpack.c.l.b16 %v110
    %v143 = vpack.c.b16 %v128, %v127
    %v144 = vpack.c.b16 %v130, %v129
    %v145 = vpack.c.b16 %v132, %v131
    %v146 = vpack.c.b16 %v134, %v133
    %v147 = vpack.c.b16 %v136, %v135
    %v148 = vpack.c.b16 %v138, %v137
    %v149 = vpack.c.b16 %v140, %v139
    %v150 = vpack.c.b16 %v142, %v141
    %159 = vmatprep.subr.bf16.mxu0 0
    %160 = vmatpush1.bf16.msra.mxu0 %v143
    %161 = vmatprep.subr.bf16.mxu0 0
    %162 = vmatpush1.bf16.msra.mxu0 %v144
    %163 = vmatprep.subr.bf16.mxu0 0
    %164 = vmatpush1.bf16.msra.mxu0 %v145
    %165 = vmatprep.subr.bf16.mxu0 0
    %166 = vmatpush1.bf16.msra.mxu0 %v146
    %167 = vmatprep.subr.bf16.mxu0 0
    %168 = vmatpush1.bf16.msra.mxu0 %v147
    %169 = vmatprep.subr.bf16.mxu0 0
    %170 = vmatpush1.bf16.msra.mxu0 %v148
    %171 = vmatprep.subr.bf16.mxu0 0
    %172 = vmatpush1.bf16.msra.mxu0 %v149
    %173 = vmatprep.subr.bf16.mxu0 0
    %174 = vmatpush1.bf16.msra.mxu0 %v150
    %175 = vmatprep.subr.bf16.mxu0 0
    %176 = vmatpush1.bf16.msra.mxu0 0
    %177 = vmatprep.subr.bf16.mxu0 0
    %178 = vmatpush1.bf16.msra.mxu0 0
    %179 = vmatprep.subr.bf16.mxu0 0
    %180 = vmatpush1.bf16.msra.mxu0 0
    %181 = vmatprep.subr.bf16.mxu0 0
    %182 = vmatpush1.bf16.msra.mxu0 0
    %183 = vmatprep.subr.bf16.mxu0 0
    %184 = vmatpush1.bf16.msra.mxu0 0
    %185 = vmatprep.subr.bf16.mxu0 0
    %186 = vmatpush1.bf16.msra.mxu0 0
    %187 = vmatprep.subr.bf16.mxu0 0
    %188 = vmatpush1.bf16.msra.mxu0 0
    %189 = vmatprep.subr.bf16.mxu0 0
    %190 = vmatpush1.bf16.msra.mxu0 0
    %191 = vmatprep.mubr.bf16.mxu0 0
    %192 = vmatmul.mubr.bf16.gmra.mrb[0].mxu0 %v94
    %v193 = vpop.f32.mrb[0].mxu0
    %v194 = vadd.f32 0.0, %v193
    %v195 = vpop.f32.mrb[0].mxu0
    %v196 = vpop.f32.mrb[0].mxu0
    %v197 = vadd.f32 0.0, %v196
    %v198 = vpop.f32.mrb[0].mxu0
    %199 = vdwg.mxu0
    %v200 = vld [vmem:[#allocation5 + $0x2] sm:$0x1]
    %v201 = vadd.f32 %v55, %v194
    %v202 = vadd.f32 %v56, %v197
    %v203 = vlaneseq
    %v204 = vshrl.u32 %v203, 7
    %v205 = vsub.s32 0, %v204
    %v206 = vrot.slane %v200, %v205
    %v207 = vadd.f32 %v201, %v206
    %v208 = vadd.f32 %v202, %v206
    %209 = vst [vmem:[#allocation8] sm:$0xff] %v207
    %210 = vst [vmem:[#allocation8 + $0x8] sm:$0xff] %v208
    // Predicated region
    $region26: #{tpu_custom_call.1} parent=1 // pred_check
      _
    $region27: #{tpu_custom_call.1} parent=1 // pred_check_branch
      %212 = sbr.rel (0) target = $region29
    $region28: #{tpu_custom_call.1} parent=1 // pred_region
      %s214 = ssub.s32 256, 256
      %215 = vsyncadd [#allocation4], %s214
      %s216 = sshll.u32 [#allocation8], 4
      %s217 = int_to_ptr.vmem [resolvable:$true] %s216
      %222 = dma.vmem_to_hbm [thread:$0]  %s217, 256, %s3, [#allocation4], 128, 128, 8
    $region29: #{tpu_custom_call.1} parent=1 // pred_fallthru
      _
    // Predicated region
    $region30: #{tpu_custom_call.1} parent=1 // pred_check
      _
    $region31: #{tpu_custom_call.1} parent=1 // pred_check_branch
      %224 = sbr.rel (0) target = $region33
    $region32: #{tpu_custom_call.1} parent=1 // pred_region
      %225 = dma.done [#allocation4], 256
    $region33: #{tpu_custom_call.1} parent=1 // pred_fallthru
      _
    %226 = vsyncpa [#allocation3], 1
    %227 = vsyncpa [#allocation6], 1
    %228 = vsyncpa [#allocation4], 1

</llo_original>
